<compile_context>
chip_gen: v6e
topology: v6e:2x2x1
jax: 0.10.0
libtpu: 0.0.40
codegen_flags: <defaults>
</compile_context>

<pallas_src>
import jax
import jax.numpy as jnp
from jax.experimental import pallas as pl
from jax.experimental.pallas import tpu as pltpu


def _round_up(x, m):
    return (x + m - 1) // m * m


# ---------------------------------------------------------------------------
# Fused Linear + ReLU kernels.
#   x_ref : (tm, tk)  bf16 activation tile
#   w_ref : (tn, tk)  bf16 weight tile, PyTorch (n_out, n_in) layout
#   b_ref : (1,  tn)  f32 bias tile
#   o_ref : (tm, tn)  output tile (caller's dtype)
#   acc   : (tm, tn)  f32 accumulator scratch (multi-K variant only)
# ---------------------------------------------------------------------------
_DOT_DIMS = (((1,), (1,)), ((), ()))  # contract x's K with W's K (trans_b)


def _linear_relu_single_k(x_ref, w_ref, b_ref, o_ref):
    # Single K step: no accumulator round trip through VMEM.
    y = jax.lax.dot_general(x_ref[...], w_ref[...], _DOT_DIMS,
                            preferred_element_type=jnp.float32)
    o_ref[...] = jnp.maximum(y + b_ref[...], 0.0).astype(o_ref.dtype)


def _linear_relu_multi_k(x_ref, w_ref, b_ref, o_ref, acc_ref):
    k = pl.program_id(2)

    @pl.when(k == 0)
    def _():
        acc_ref[...] = jnp.zeros_like(acc_ref)

    acc_ref[...] += jax.lax.dot_general(x_ref[...], w_ref[...], _DOT_DIMS,
                                        preferred_element_type=jnp.float32)

    @pl.when(k == pl.num_programs(2) - 1)
    def _():
        y = acc_ref[...] + b_ref[...]
        o_ref[...] = jnp.maximum(y, 0.0).astype(o_ref.dtype)


def relu_layer(x, weight, bias, *, tm_cap=256, tn_cap=512, tk_cap=1024):
    """y = relu(x @ weight.T + bias).

    `weight` has PyTorch nn.Linear layout (n_out, n_in); `x` may have arbitrary
    leading dims. Matmul runs in bf16 on the MXU with f32 accumulation; the
    result is written directly in x.dtype.
    """
    out_dtype = x.dtype
    *lead, n_in = x.shape
    n_out = weight.shape[0]
    M = 1
    for d in lead:
        M *= d

    # bf16 MXU operands; bias stays f32 (added to the f32 accumulator).
    x2 = x.reshape(M, n_in)
    if x2.dtype != jnp.bfloat16:
        x2 = x2.astype(jnp.bfloat16)
    w2 = weight if weight.dtype == jnp.bfloat16 else weight.astype(jnp.bfloat16)
    b2 = bias if bias.dtype == jnp.float32 else bias.astype(jnp.float32)
    b2 = b2.reshape(1, n_out)

    # ---- tile selection -----------------------------------------------------
    Mp = _round_up(M, 8)
    Kp = _round_up(n_in, 128)
    Np = _round_up(n_out, 128)

    tm = min(tm_cap, Mp)
    tk = min(tk_cap, Kp)
    # Full output width when it fits: x and W each stream from HBM exactly once.
    tn = Np if Np <= 1024 else min(tn_cap, Np)

    Mp = _round_up(Mp, tm)
    Kp = _round_up(Kp, tk)
    Np = _round_up(Np, tn)

    # v7x has 2 TensorCores; only 'parallel' axes shard across them. If the
    # parallel grid collapsed to a single program, halve tn (kept 128-aligned)
    # so both cores get work.
    if (Mp // tm) * (Np // tn) < 2 and tn >= 256 and (tn // 2) % 128 == 0:
        tn //= 2

    grid_m, grid_n, grid_k = Mp // tm, Np // tn, Kp // tk

    # ---- pad only when a dim actually needs it ------------------------------
    if (Mp, Kp) != (M, n_in):
        x2 = jnp.pad(x2, ((0, Mp - M), (0, Kp - n_in)))
    if (Np, Kp) != (n_out, n_in):
        w2 = jnp.pad(w2, ((0, Np - n_out), (0, Kp - n_in)))
    if Np != n_out:
        b2 = jnp.pad(b2, ((0, 0), (0, Np - n_out)))

    cost = pl.CostEstimate(
        flops=2 * M * n_in * n_out,
        transcendentals=0,
        bytes_accessed=(x2.size * x2.dtype.itemsize
                        + w2.size * w2.dtype.itemsize
                        + b2.size * b2.dtype.itemsize
                        + Mp * Np * jnp.dtype(out_dtype).itemsize),
    )
    # 48 MiB scoped VMEM: safe on v7x (64 MiB physical) and roomy on v5e/v6e.
    compiler_params_2d = pltpu.CompilerParams(
        dimension_semantics=("parallel", "parallel"),
        vmem_limit_bytes=48 * 1024 * 1024,
    )
    compiler_params_3d = pltpu.CompilerParams(
        dimension_semantics=("parallel", "parallel", "arbitrary"),
        vmem_limit_bytes=48 * 1024 * 1024,
    )

    if grid_k == 1:
        out = pl.pallas_call(
            _linear_relu_single_k,
            out_shape=jax.ShapeDtypeStruct((Mp, Np), out_dtype),
            grid=(grid_m, grid_n),
            in_specs=[
                pl.BlockSpec((tm, tk), lambda i, j: (i, 0)),
                pl.BlockSpec((tn, tk), lambda i, j: (j, 0)),
                pl.BlockSpec((1, tn), lambda i, j: (0, j)),
            ],
            out_specs=pl.BlockSpec((tm, tn), lambda i, j: (i, j)),
            compiler_params=compiler_params_2d,
            cost_estimate=cost,
        )(x2, w2, b2)
    else:
        out = pl.pallas_call(
            _linear_relu_multi_k,
            out_shape=jax.ShapeDtypeStruct((Mp, Np), out_dtype),
            grid=(grid_m, grid_n, grid_k),
            in_specs=[
                pl.BlockSpec((tm, tk), lambda i, j, k: (i, k)),
                pl.BlockSpec((tn, tk), lambda i, j, k: (j, k)),
                pl.BlockSpec((1, tn), lambda i, j, k: (0, j)),
            ],
            out_specs=pl.BlockSpec((tm, tn), lambda i, j, k: (i, j)),
            scratch_shapes=[pltpu.VMEM((tm, tn), jnp.float32)],
            compiler_params=compiler_params_3d,
            cost_estimate=cost,
        )(x2, w2, b2)

    if (Mp, Np) != (M, n_out):
        out = out[:M, :n_out]
    return out.reshape(*lead, n_out)


# ---------------------------------------------------------------------------
# Deterministic nn.Linear-style parameter init.
# ---------------------------------------------------------------------------
def init_params(key, n_in, n_out):
    kw, kb = jax.random.split(key)
    bound = 1.0 / (n_in ** 0.5)
    weight = jax.random.uniform(kw, (n_out, n_in), jnp.float32, -bound, bound)
    bias = jax.random.uniform(kb, (n_out,), jnp.float32, -bound, bound)
    return weight, bias


if __name__ == "__main__":
    key = jax.random.PRNGKey(0)
    k1, k2, k3, k4, k5, k6 = jax.random.split(key, 6)

    fwd = jax.jit(relu_layer)

    def ref(x, w, b):
        return jnp.maximum(
            jnp.einsum("...i,oi->...o", x, w,
                       precision=jax.lax.Precision.HIGHEST) + b, 0.0)

    # --- Case 1: small single-tile (batch=2, seq=8, n_in=32 -> n_out=64) ----
    n_in, n_out = 32, 64
    w, b = init_params(k1, n_in, n_out)
    x = jax.random.normal(k2, (2, 8, n_in), jnp.float32)
    y = fwd(x, w, b)
    jax.block_until_ready(y)
    assert y.shape == (2, 8, n_out)
    assert bool(jnp.all(jnp.isfinite(y)))
    assert bool(jnp.allclose(y, ref(x, w, b), atol=3e-2, rtol=3e-2))

    # --- Case 2: unaligned dims, padded tails --------------------------------
    n_in2, n_out2 = 260, 384
    w2, b2 = init_params(k3, n_in2, n_out2)
    x2 = jax.random.normal(k4, (3, n_in2), jnp.float32)
    y2 = fwd(x2, w2, b2)
    jax.block_until_ready(y2)
    assert y2.shape == (3, n_out2)
    assert bool(jnp.all(jnp.isfinite(y2)))
    assert bool(jnp.allclose(y2, ref(x2, w2, b2), atol=3e-2, rtol=3e-2))

    # --- Case 3: multi-K accumulation + split-N parallel grid ----------------
    n_in3, n_out3 = 2048, 512
    w3, b3 = init_params(k5, n_in3, n_out3)
    x3 = jax.random.normal(k6, (4, 16, n_in3), jnp.float32)
    y3 = fwd(x3, w3, b3)
    jax.block_until_ready(y3)
    assert y3.shape == (4, 16, n_out3)
    assert bool(jnp.all(jnp.isfinite(y3)))
    assert bool(jnp.allclose(y3, ref(x3, w3, b3), atol=5e-2, rtol=5e-2))

    print("KERNEL_OK")
</pallas_src>

<mosaic_0001>
module attributes {stable_mosaic.version = 11 : i64} {
  func.func @_linear_relu_single_k(%arg0: i32, %arg1: i32, %arg2: memref<16x128xbf16, #tpu.memory_space<vmem>>, %arg3: memref<128x128xbf16, #tpu.memory_space<vmem>>, %arg4: memref<1x128xf32, #tpu.memory_space<vmem>>, %arg5: memref<16x128xf32, #tpu.memory_space<vmem>>) attributes {dimension_semantics = [#tpu.dimension_semantics<parallel>, #tpu.dimension_semantics<parallel>], iteration_bounds = array<i64: 1, 1>, scalar_prefetch = 0 : i64, scratch_operands = 0 : i64, tpu.core_type = #tpu.core_type<tc>, window_params = [{transform_indices = @transform_0, window_bounds = array<i64: 16, 128>}, {transform_indices = @transform_1, window_bounds = array<i64: 128, 128>}, {transform_indices = @transform_2, window_bounds = array<i64: 1, 128>}, {transform_indices = @transform_3, window_bounds = array<i64: 16, 128>}]} {
    %c0 = arith.constant 0 : index
    %c0_0 = arith.constant 0 : index
    %0 = vector.load %arg2[%c0, %c0_0] : memref<16x128xbf16, #tpu.memory_space<vmem>>, vector<16x128xbf16>
    %c0_1 = arith.constant 0 : index
    %c0_2 = arith.constant 0 : index
    %1 = vector.load %arg3[%c0_1, %c0_2] : memref<128x128xbf16, #tpu.memory_space<vmem>>, vector<128x128xbf16>
    %cst = arith.constant dense<0.000000e+00> : vector<16x128xf32>
    %2 = tpu.matmul %0, %1, %cst {dimension_numbers = #tpu.dot_dimension_numbers<[1], [1], [0], [0], [0, 0, 1, 0], [], []>} : vector<16x128xbf16>, vector<128x128xbf16>, vector<16x128xf32> -> vector<16x128xf32>
    %c0_3 = arith.constant 0 : index
    %c0_4 = arith.constant 0 : index
    %3 = vector.load %arg4[%c0_3, %c0_4] : memref<1x128xf32, #tpu.memory_space<vmem>>, vector<1x128xf32>
    %4 = vector.broadcast %3 : vector<1x128xf32> to vector<16x128xf32>
    %5 = arith.addf %2, %4 : vector<16x128xf32>
    %cst_5 = arith.constant 0.000000e+00 : f32
    %6 = vector.broadcast %cst_5 : f32 to vector<16x128xf32>
    %7 = arith.maximumf %5, %6 : vector<16x128xf32>
    %c0_6 = arith.constant 0 : index
    %c0_7 = arith.constant 0 : index
    %8 = vector.load %arg5[%c0_6, %c0_7] : memref<16x128xf32, #tpu.memory_space<vmem>>, vector<16x128xf32>
    tpu.vector_store %arg5[%c0_6, %c0_7], %7 {strides = array<i32>} : memref<16x128xf32, #tpu.memory_space<vmem>>, vector<16x128xf32>,
    return
  }
  func.func @transform_0(%arg0: i32, %arg1: i32) -> (i32, i32) {
    %c0_i32 = arith.constant 0 : i32
    %c0_i32_0 = arith.constant 0 : i32
    return %arg0, %c0_i32 : i32, i32
  }
  func.func @transform_1(%arg0: i32, %arg1: i32) -> (i32, i32) {
    %c0_i32 = arith.constant 0 : i32
    %c0_i32_0 = arith.constant 0 : i32
    return %arg1, %c0_i32 : i32, i32
  }
  func.func @transform_2(%arg0: i32, %arg1: i32) -> (i32, i32) {
    %c0_i32 = arith.constant 0 : i32
    %c0_i32_0 = arith.constant 0 : i32
    return %c0_i32, %arg1 : i32, i32
  }
  func.func @transform_3(%arg0: i32, %arg1: i32) -> (i32, i32) {
    %c0_i32 = arith.constant 0 : i32
    return %arg0, %arg1 : i32, i32
  }
}

</mosaic_0001>

<llo_original>
// kernel: relu_layer.1
$region0: #{relu_layer.1}
  #allocation0 [shape = 'u32[]', space=smem, size = 0x4, offset = 0x4, fixed_abs, tag = 'smem constant byte address 0x4 - core index']
  #allocation1 [shape = 'u32[144,128]{1,0:T(1,128)}', space=vmem, size = 0x12000, scoped, tag = 'internal scratch']
  %s0 = inlined_call_operand.vmem [shape: bf16[16,128], index: 0, kind: input, shape index: {}]
  %s1 = inlined_call_operand.vmem [shape: bf16[128,128], index: 1, kind: input, shape index: {}]
  %s2 = inlined_call_operand.vmem [shape: f32[1,128], index: 2, kind: input, shape index: {}]
  %s3 = inlined_call_operand.vmem [shape: f32[16,128], index: 3, kind: output, shape index: {}]
  %s4 = sld [smem:[#allocation0]]
  $region22: #{relu_layer.1} parent=0
    _
  %s6 = ssub.s32 1, %s4
  %s7 = scalar_select 0, %s6, %s4
  // Predicated region
  $region2: #{relu_layer.1} parent=0 // pred_check
    _
  $region3: #{relu_layer.1} parent=0 // pred_check_branch
    %9 = sbr.rel (0) target = $region5
  $region4: #{relu_layer.1} parent=0 // pred_region
    _
  $region5: #{relu_layer.1} parent=0 // pred_fallthru
    _
  // Predicated region
  $region6: #{relu_layer.1} parent=0 // pred_check
    _
  $region7: #{relu_layer.1} parent=0 // pred_check_branch
    %11 = sbr.rel (0) target = $region9
  $region8: #{relu_layer.1} parent=0 // pred_region
    _
  $region9: #{relu_layer.1} parent=0 // pred_fallthru
    _
  // Predicated region
  $region10: #{relu_layer.1} parent=0 // pred_check
    _
  $region11: #{relu_layer.1} parent=0 // pred_check_branch
    %13 = sbr.rel (0) target = $region13
  $region12: #{relu_layer.1} parent=0 // pred_region
    _
  $region13: #{relu_layer.1} parent=0 // pred_fallthru
    _
  %v15 = vld [vmem:[%s0] sm:$0xf]
  %v16 = vld [vmem:[%s0 + $0x4] sm:$0xf]
  %v17 = vld [vmem:[%s1] sm:$0xf]
  %v18 = vld [vmem:[%s1 + $0x4] sm:$0xf]
  %v19 = vld [vmem:[%s1 + $0x8] sm:$0xf]
  %v20 = vld [vmem:[%s1 + $0xc] sm:$0xf]
  %v21 = vld [vmem:[%s1 + $0x10] sm:$0xf]
  %v22 = vld [vmem:[%s1 + $0x14] sm:$0xf]
  %v23 = vld [vmem:[%s1 + $0x18] sm:$0xf]
  %v24 = vld [vmem:[%s1 + $0x1c] sm:$0xf]
  %v25 = vld [vmem:[%s1 + $0x20] sm:$0xf]
  %v26 = vld [vmem:[%s1 + $0x24] sm:$0xf]
  %v27 = vld [vmem:[%s1 + $0x28] sm:$0xf]
  %v28 = vld [vmem:[%s1 + $0x2c] sm:$0xf]
  %v29 = vld [vmem:[%s1 + $0x30] sm:$0xf]
  %v30 = vld [vmem:[%s1 + $0x34] sm:$0xf]
  %v31 = vld [vmem:[%s1 + $0x38] sm:$0xf]
  %v32 = vld [vmem:[%s1 + $0x3c] sm:$0xf]
  %v33 = vld [vmem:[%s2] sm:$0x1]
  %v35 = vlaneseq
  %v36 = vshrl.u32 %v35, 7
  %v37 = vsub.s32 0, %v36
  %v38 = vrot.slane %v33, %v37
  %v42 = vunpack.c.l.b16 %v15
  %v43 = vunpack.c.l.b16 %v16
  %v44 = vpack.c.b16 %v43, %v42
  %v62 = vunpack.c.l.b16 %v17
  %v63 = vunpack.c.l.b16 %v18
  %v64 = vunpack.c.l.b16 %v19
  %v65 = vunpack.c.l.b16 %v20
  %v66 = vunpack.c.l.b16 %v21
  %v67 = vunpack.c.l.b16 %v22
  %v68 = vunpack.c.l.b16 %v23
  %v69 = vunpack.c.l.b16 %v24
  %v70 = vunpack.c.l.b16 %v25
  %v71 = vunpack.c.l.b16 %v26
  %v72 = vunpack.c.l.b16 %v27
  %v73 = vunpack.c.l.b16 %v28
  %v74 = vunpack.c.l.b16 %v29
  %v75 = vunpack.c.l.b16 %v30
  %v76 = vunpack.c.l.b16 %v31
  %v77 = vunpack.c.l.b16 %v32
  %v78 = vpack.c.b16 %v63, %v62
  %v79 = vpack.c.b16 %v65, %v64
  %v80 = vpack.c.b16 %v67, %v66
  %v81 = vpack.c.b16 %v69, %v68
  %v82 = vpack.c.b16 %v71, %v70
  %v83 = vpack.c.b16 %v73, %v72
  %v84 = vpack.c.b16 %v75, %v74
  %v85 = vpack.c.b16 %v77, %v76
  %94 = vmatprep.subr.bf16.mxu0 0
  %95 = vmatpush1.bf16.xpose.msra.mxu0 %v85
  %96 = vmatprep.subr.bf16.mxu0 0
  %97 = vmatpush1.bf16.xpose.msra.mxu0 %v84
  %98 = vmatprep.subr.bf16.mxu0 0
  %99 = vmatpush1.bf16.xpose.msra.mxu0 %v83
  %100 = vmatprep.subr.bf16.mxu0 0
  %101 = vmatpush1.bf16.xpose.msra.mxu0 %v82
  %102 = vmatprep.subr.bf16.mxu0 0
  %103 = vmatpush1.bf16.xpose.msra.mxu0 %v81
  %104 = vmatprep.subr.bf16.mxu0 0
  %105 = vmatpush1.bf16.xpose.msra.mxu0 %v80
  %106 = vmatprep.subr.bf16.mxu0 0
  %107 = vmatpush1.bf16.xpose.msra.mxu0 %v79
  %108 = vmatprep.subr.bf16.mxu0 0
  %109 = vmatpush1.bf16.xpose.msra.mxu0 %v78
  %110 = vmatprep.subr.bf16.mxu0 0
  %111 = vmatpush2.bf16.xpose.msra.mxu0 0
  %112 = vmatprep.subr.bf16.mxu0 0
  %113 = vmatpush2.bf16.xpose.msra.mxu0 0
  %114 = vmatprep.subr.bf16.mxu0 0
  %115 = vmatpush2.bf16.xpose.msra.mxu0 0
  %116 = vmatprep.subr.bf16.mxu0 0
  %117 = vmatpush2.bf16.xpose.msra.mxu0 0
  %118 = vmatprep.subr.bf16.mxu0 0
  %119 = vmatpush2.bf16.xpose.msra.mxu0 0
  %120 = vmatprep.subr.bf16.mxu0 0
  %121 = vmatpush2.bf16.xpose.msra.mxu0 0
  %122 = vmatprep.subr.bf16.mxu0 0
  %123 = vmatpush2.bf16.xpose.msra.mxu0 0
  %124 = vmatprep.subr.bf16.mxu0 0
  %125 = vmatpush2.bf16.xpose.msra.mxu0 0
  %126 = vmatprep.mubr.bf16.mxu0 0
  %127 = vmatmul.mubr.bf16.gmra.mxu0 %v44
  %v128 = vpop.f32.mrf.mxu0
  %v129 = vadd.f32 %v38, %v128
  %v130 = vpop.f32.mrf.mxu0
  %v131 = vpop.f32.mrf.mxu0
  %v132 = vadd.f32 %v38, %v131
  %v133 = vpop.f32.mrf.mxu0
  %134 = vdwg.mxu0
  %v135 = vmax.f32 %v129, 0.0
  %v136 = vmax.f32 %v132, 0.0
  %137 = vst [vmem:[%s3] sm:$0xff] %v135
  %138 = vst [vmem:[%s3 + $0x8] sm:$0xff] %v136
  // Predicated region
  $region14: #{relu_layer.1} parent=0 // pred_check
    _
  $region15: #{relu_layer.1} parent=0 // pred_check_branch
    %140 = sbr.rel (0) target = $region17
  $region16: #{relu_layer.1} parent=0 // pred_region
    _
  $region17: #{relu_layer.1} parent=0 // pred_fallthru
    _
  // Predicated region
  $region18: #{relu_layer.1} parent=0 // pred_check
    _
  $region19: #{relu_layer.1} parent=0 // pred_check_branch
    %142 = sbr.rel (0) target = $region21
  $region20: #{relu_layer.1} parent=0 // pred_region
    _
  $region21: #{relu_layer.1} parent=0 // pred_fallthru
    _

</llo_original>
